<compile_context>
chip_gen: v6e
topology: v6e:2x2x1
jax: 0.10.0
libtpu: 0.0.40
codegen_flags: <defaults>
</compile_context>

<pallas_src>
import math
import jax
import jax.numpy as jnp
from jax.experimental import pallas as pl
from jax.experimental.pallas import tpu as pltpu


def _round_up(n, m):
    return ((n + m - 1) // m) * m


def _adv_net_kernel(x_ref, w1_ref, b1_ref, w2_ref, b2_ref, w3_ref, b3_ref, o_ref):
    # x tile: (TB, in_feature) f32 streamed from HBM; cast to bf16 in-register for the MXU.
    x = x_ref[...].astype(jnp.bfloat16)

    # ad_layer1 + ReLU (dropout1 identity in eval mode). bf16 MXU, f32 accumulation.
    h1 = jnp.dot(x, w1_ref[...], preferred_element_type=jnp.float32) + b1_ref[...]
    h1 = jnp.maximum(h1, 0.0)

    # ad_layer2 + ReLU (dropout2 identity in eval mode).
    h2 = jnp.dot(h1.astype(jnp.bfloat16), w2_ref[...],
                 preferred_element_type=jnp.float32) + b2_ref[...]
    h2 = jnp.maximum(h2, 0.0)

    # ad_layer3: output width 1 -> VPU multiply + lane reduction (keeps the MXU free),
    # scalar bias read from SMEM.
    y = jnp.sum(h2 * w3_ref[...], axis=-1, keepdims=True) + b3_ref[0, 0]

    # Sigmoid: exp and approx reciprocal both run on the EUP (divide stays off the VALU).
    y_sig = pl.reciprocal(1.0 + jnp.exp(-y), approx=True)

    # Compact (TB, 1) store: 4 bytes of HBM write per batch element.
    o_ref[...] = y_sig.astype(o_ref.dtype)

    # TODO(synk): training-mode dropout (p=0.5) and the gradient-reversal hook are
    # backward/training-only concerns and are not part of the eval forward pass.


def adversarial_network_forward(x, params, *, tb=None):
    """x: (B, in_feature) float32. params: dict of w1,b1,w2,b2,w3,b3 (w* stored as (in, out))."""
    B, in_feature = x.shape
    w1, b1 = params["w1"], params["b1"]          # (in, hidden), (1, hidden)
    w2, b2 = params["w2"], params["b2"]          # (hidden, hidden), (1, hidden)
    w3, b3 = params["w3"], params["b3"]          # (hidden, 1), (1, 1)
    hidden = w1.shape[1]

    # Physical VMEM per TensorCore (64 MiB on v7x, 128 MiB on v5e/v6e); conservative fallback.
    try:
        vmem_cap = int(getattr(pltpu.get_tpu_info(), "vmem_capacity_bytes", 64 * 1024 * 1024))
    except Exception:
        vmem_cap = 64 * 1024 * 1024

    # Batch tiling: pad the batch only to a multiple of 8 (sublane rule), force TB to a
    # multiple of 8, and let pl.cdiv handle a ragged last block (padded rows produce garbage
    # that is never written back / never returned).
    if tb is None:
        tb = 1024 if vmem_cap >= 96 * 1024 * 1024 else 512
    B_pad = _round_up(B, 8)
    if B_pad != B:
        x = jnp.pad(x, ((0, B_pad - B), (0, 0)))
    TB = min(_round_up(tb, 8), B_pad)
    if B_pad >= 16 and TB >= B_pad:
        # Guarantee >= 2 grid steps so the "parallel" batch axis can use both v7x TensorCores.
        TB = _round_up((B_pad + 1) // 2, 8)
    grid = (pl.cdiv(B_pad, TB),)

    # Hidden padded to 256 lanes when large enough to be MXU-bound (v6e/v7x 2x256^2 MXU),
    # 128 otherwise. Zero padding is exact: padded columns stay 0 through ReLU and w3.
    hid_pad = _round_up(hidden, 256 if hidden >= 512 else 128)

    # Weights are small and read once per call -> pad/cast host-side (activations are not).
    w1p = jnp.zeros((in_feature, hid_pad), jnp.bfloat16).at[:, :hidden].set(
        w1.astype(jnp.bfloat16))
    w2p = jnp.zeros((hid_pad, hid_pad), jnp.bfloat16).at[:hidden, :hidden].set(
        w2.astype(jnp.bfloat16))
    b1p = jnp.zeros((1, hid_pad), jnp.float32).at[:, :hidden].set(b1.reshape(1, hidden))
    b2p = jnp.zeros((1, hid_pad), jnp.float32).at[:, :hidden].set(b2.reshape(1, hidden))
    w3p = jnp.zeros((1, hid_pad), jnp.float32).at[:, :hidden].set(w3.reshape(1, hidden))
    b3p = b3.reshape(1, 1).astype(jnp.float32)
    # TODO(synk): for very large hidden on v7x (hid_pad^2 bf16 approaching 64 MiB), tile W2
    # over K with an inner emit_pipeline instead of keeping it fully resident.

    # VMEM footprint: single-buffered resident weights + double-buffered x/out tiles + f32/bf16
    # intermediates; 1.5x safety margin, clamped to 75% of physical VMEM (headroom for Mosaic
    # internal scratch / semaphores).
    resident = (w1p.size + w2p.size) * 2 + (b1p.size + b2p.size + w3p.size) * 4
    streamed = 2 * (TB * in_feature * 4 + TB * 4)
    interm = TB * in_feature * 2 + TB * hid_pad * (4 + 4 + 2)
    vmem_budget = int(min(max(int((resident + streamed + interm) * 1.5), 16 * 1024 * 1024),
                          int(vmem_cap * 0.75)))

    resident_kw = dict(index_map=lambda i: (0, 0), pipeline_mode=pl.Buffered(1))

    out = pl.pallas_call(
        _adv_net_kernel,
        out_shape=jax.ShapeDtypeStruct((B_pad, 1), jnp.float32),
        grid=grid,
        in_specs=[
            # x: streamed over batch, double-buffered, unpadded feature dim, cast in-kernel.
            pl.BlockSpec((TB, in_feature), lambda i: (i, 0)),
            pl.BlockSpec((in_feature, hid_pad), **resident_kw),   # W1: resident, single buffer
            pl.BlockSpec((1, hid_pad), **resident_kw),            # b1
            pl.BlockSpec((hid_pad, hid_pad), **resident_kw),      # W2
            pl.BlockSpec((1, hid_pad), **resident_kw),            # b2
            pl.BlockSpec((1, hid_pad), **resident_kw),            # w3 row
            pl.BlockSpec(memory_space=pltpu.MemorySpace.SMEM),    # b3 scalar in SMEM
        ],
        out_specs=pl.BlockSpec((TB, 1), lambda i: (i, 0)),
        compiler_params=pltpu.CompilerParams(
            dimension_semantics=("parallel",),
            vmem_limit_bytes=vmem_budget,
        ),
    )(x, w1p, b1p, w2p, b2p, w3p, b3p)

    # NOTE: the raw pallas_call output must not be consumed directly -- padded rows contain
    # sigmoid(b3) garbage; only the first B rows are valid.
    return out[:B]


def init_params(key, in_feature, hidden_size):
    """Deterministic init matching the torch module: xavier_normal_ weights, zero biases."""
    k1, k2, k3 = jax.random.split(key, 3)

    def xavier_normal(k, fan_in, fan_out):
        std = math.sqrt(2.0 / (fan_in + fan_out))
        # stored as (in, out) so the kernel computes x @ W
        return std * jax.random.normal(k, (fan_in, fan_out), dtype=jnp.float32)

    return {
        "w1": xavier_normal(k1, in_feature, hidden_size),
        "b1": jnp.zeros((1, hidden_size), jnp.float32),
        "w2": xavier_normal(k2, hidden_size, hidden_size),
        "b2": jnp.zeros((1, hidden_size), jnp.float32),
        "w3": xavier_normal(k3, hidden_size, 1),
        "b3": jnp.zeros((1, 1), jnp.float32),
    }


if __name__ == "__main__":
    in_feature = 32
    hidden_size = 32
    batch = 8

    key = jax.random.PRNGKey(0)
    k_params, k_x = jax.random.split(key)

    params = init_params(k_params, in_feature, hidden_size)
    x = jax.random.normal(k_x, (batch, in_feature), dtype=jnp.float32)

    y = adversarial_network_forward(x, params)
    y = jax.block_until_ready(y)

    # reference check in plain JAX (eval-mode, f32) -- kernel runs bf16 matmuls with f32
    # accumulation + approx reciprocal, so tolerance is loosened accordingly.
    h1 = jnp.maximum(x @ params["w1"] + params["b1"], 0.0)
    h2 = jnp.maximum(h1 @ params["w2"] + params["b2"], 0.0)
    y_ref = jax.nn.sigmoid(h2 @ params["w3"] + params["b3"])
    assert y.shape == (batch, 1)
    assert jnp.allclose(y, y_ref, atol=2e-2), "mismatch vs reference"

    print("KERNEL_OK")
</pallas_src>

<mosaic_0001>
module attributes {stable_mosaic.version = 11 : i64} {
  func.func @_adv_net_kernel(%arg0: i32, %arg1: memref<8x32xf32, #tpu.memory_space<vmem>>, %arg2: memref<32x128xbf16, #tpu.memory_space<vmem>>, %arg3: memref<1x128xf32, #tpu.memory_space<vmem>>, %arg4: memref<128x128xbf16, #tpu.memory_space<vmem>>, %arg5: memref<1x128xf32, #tpu.memory_space<vmem>>, %arg6: memref<1x128xf32, #tpu.memory_space<vmem>>, %arg7: memref<1x1xf32, #tpu.memory_space<smem>>, %arg8: memref<8x1xf32, #tpu.memory_space<vmem>>) attributes {dimension_semantics = [#tpu.dimension_semantics<parallel>], iteration_bounds = array<i64: 1>, scalar_prefetch = 0 : i64, scratch_operands = 0 : i64, tpu.core_type = #tpu.core_type<tc>, window_params = [{transform_indices = @transform_0, window_bounds = array<i64: 8, 32>}, {pipeline_mode = #tpu.pipeline_mode<synchronous>, transform_indices = @transform_1, window_bounds = array<i64: 32, 128>}, {pipeline_mode = #tpu.pipeline_mode<synchronous>, transform_indices = @transform_2, window_bounds = array<i64: 1, 128>}, {pipeline_mode = #tpu.pipeline_mode<synchronous>, transform_indices = @transform_3, window_bounds = array<i64: 128, 128>}, {pipeline_mode = #tpu.pipeline_mode<synchronous>, transform_indices = @transform_4, window_bounds = array<i64: 1, 128>}, {pipeline_mode = #tpu.pipeline_mode<synchronous>, transform_indices = @transform_5, window_bounds = array<i64: 1, 128>}, {transform_indices = @transform_6, window_bounds = array<i64: 1, 1>}, {transform_indices = @transform_7, window_bounds = array<i64: 8, 1>}]} {
    %c0 = arith.constant 0 : index
    %c0_0 = arith.constant 0 : index
    %0 = vector.load %arg1[%c0, %c0_0] : memref<8x32xf32, #tpu.memory_space<vmem>>, vector<8x32xf32>
    %1 = arith.truncf %0 : vector<8x32xf32> to vector<8x32xbf16>
    %c0_1 = arith.constant 0 : index
    %c0_2 = arith.constant 0 : index
    %2 = vector.load %arg2[%c0_1, %c0_2] : memref<32x128xbf16, #tpu.memory_space<vmem>>, vector<32x128xbf16>
    %cst = arith.constant dense<0.000000e+00> : vector<8x128xf32>
    %3 = tpu.matmul %1, %2, %cst {dimension_numbers = #tpu.dot_dimension_numbers<[1], [0], [0], [1], [0, 0, 1, 1], [], []>} : vector<8x32xbf16>, vector<32x128xbf16>, vector<8x128xf32> -> vector<8x128xf32>
    %c0_3 = arith.constant 0 : index
    %c0_4 = arith.constant 0 : index
    %4 = vector.load %arg3[%c0_3, %c0_4] : memref<1x128xf32, #tpu.memory_space<vmem>>, vector<1x128xf32>
    %5 = vector.broadcast %4 : vector<1x128xf32> to vector<8x128xf32>
    %6 = arith.addf %3, %5 : vector<8x128xf32>
    %cst_5 = arith.constant 0.000000e+00 : f32
    %7 = vector.broadcast %cst_5 : f32 to vector<8x128xf32>
    %8 = arith.maximumf %6, %7 : vector<8x128xf32>
    %9 = arith.truncf %8 : vector<8x128xf32> to vector<8x128xbf16>
    %c0_6 = arith.constant 0 : index
    %c0_7 = arith.constant 0 : index
    %10 = vector.load %arg4[%c0_6, %c0_7] : memref<128x128xbf16, #tpu.memory_space<vmem>>, vector<128x128xbf16>
    %cst_8 = arith.constant dense<0.000000e+00> : vector<8x128xf32>
    %11 = tpu.matmul %9, %10, %cst_8 {dimension_numbers = #tpu.dot_dimension_numbers<[1], [0], [0], [1], [0, 0, 1, 1], [], []>} : vector<8x128xbf16>, vector<128x128xbf16>, vector<8x128xf32> -> vector<8x128xf32>
    %c0_9 = arith.constant 0 : index
    %c0_10 = arith.constant 0 : index
    %12 = vector.load %arg5[%c0_9, %c0_10] : memref<1x128xf32, #tpu.memory_space<vmem>>, vector<1x128xf32>
    %13 = vector.broadcast %12 : vector<1x128xf32> to vector<8x128xf32>
    %14 = arith.addf %11, %13 : vector<8x128xf32>
    %cst_11 = arith.constant 0.000000e+00 : f32
    %15 = vector.broadcast %cst_11 : f32 to vector<8x128xf32>
    %16 = arith.maximumf %14, %15 : vector<8x128xf32>
    %c0_12 = arith.constant 0 : index
    %c0_13 = arith.constant 0 : index
    %17 = vector.load %arg6[%c0_12, %c0_13] : memref<1x128xf32, #tpu.memory_space<vmem>>, vector<1x128xf32>
    %18 = vector.broadcast %17 : vector<1x128xf32> to vector<8x128xf32>
    %19 = arith.mulf %16, %18 : vector<8x128xf32>
    %cst_14 = arith.constant dense<0.000000e+00> : vector<8xf32>
    %20 = vector.multi_reduction <add>, %19, %cst_14 [1] : vector<8x128xf32> to vector<8xf32>
    %21 = vector.shape_cast %20 : vector<8xf32> to vector<8x1xf32>
    %c0_15 = arith.constant 0 : index
    %c0_16 = arith.constant 0 : index
    %22 = memref.load %arg7[%c0_15, %c0_16] : memref<1x1xf32, #tpu.memory_space<smem>>
    %23 = vector.broadcast %22 : f32 to vector<8x1xf32>
    %24 = arith.addf %21, %23 : vector<8x1xf32>
    %cst_17 = arith.constant 0.000000e+00 : f32
    %25 = vector.broadcast %cst_17 : f32 to vector<8x1xf32>
    %26 = arith.subf %25, %24 : vector<8x1xf32>
    %27 = math.exp %26 : vector<8x1xf32>
    %cst_18 = arith.constant 1.000000e+00 : f32
    %28 = vector.broadcast %cst_18 : f32 to vector<8x1xf32>
    %29 = arith.addf %28, %27 : vector<8x1xf32>
    %30 = tpu.reciprocal %29 {approx = true} : vector<8x1xf32> -> vector<8x1xf32>
    %c0_19 = arith.constant 0 : index
    %c0_20 = arith.constant 0 : index
    %31 = vector.load %arg8[%c0_19, %c0_20] : memref<8x1xf32, #tpu.memory_space<vmem>>, vector<8x1xf32>
    tpu.vector_store %arg8[%c0_19, %c0_20], %30 {strides = array<i32>} : memref<8x1xf32, #tpu.memory_space<vmem>>, vector<8x1xf32>,
    return
  }
  func.func @transform_0(%arg0: i32) -> (i32, i32) {
    %c0_i32 = arith.constant 0 : i32
    %c0_i32_0 = arith.constant 0 : i32
    return %arg0, %c0_i32 : i32, i32
  }
  func.func @transform_1(%arg0: i32) -> (i32, i32) {
    %c0_i32 = arith.constant 0 : i32
    %c0_i32_0 = arith.constant 0 : i32
    %c0_i32_1 = arith.constant 0 : i32
    return %c0_i32, %c0_i32_0 : i32, i32
  }
  func.func @transform_2(%arg0: i32) -> (i32, i32) {
    %c0_i32 = arith.constant 0 : i32
    %c0_i32_0 = arith.constant 0 : i32
    %c0_i32_1 = arith.constant 0 : i32
    return %c0_i32, %c0_i32_0 : i32, i32
  }
  func.func @transform_3(%arg0: i32) -> (i32, i32) {
    %c0_i32 = arith.constant 0 : i32
    %c0_i32_0 = arith.constant 0 : i32
    %c0_i32_1 = arith.constant 0 : i32
    return %c0_i32, %c0_i32_0 : i32, i32
  }
  func.func @transform_4(%arg0: i32) -> (i32, i32) {
    %c0_i32 = arith.constant 0 : i32
    %c0_i32_0 = arith.constant 0 : i32
    %c0_i32_1 = arith.constant 0 : i32
    return %c0_i32, %c0_i32_0 : i32, i32
  }
  func.func @transform_5(%arg0: i32) -> (i32, i32) {
    %c0_i32 = arith.constant 0 : i32
    %c0_i32_0 = arith.constant 0 : i32
    %c0_i32_1 = arith.constant 0 : i32
    return %c0_i32, %c0_i32_0 : i32, i32
  }
  func.func @transform_6(%arg0: i32) -> (i32, i32) {
    %c0_i32 = arith.constant 0 : i32
    %c0_i32_0 = arith.constant 0 : i32
    %c0_i32_1 = arith.constant 0 : i32
    return %c0_i32, %c0_i32_0 : i32, i32
  }
  func.func @transform_7(%arg0: i32) -> (i32, i32) {
    %c0_i32 = arith.constant 0 : i32
    %c0_i32_0 = arith.constant 0 : i32
    return %arg0, %c0_i32 : i32, i32
  }
}

</mosaic_0001>

<llo_original>
// kernel: tpu_custom_call.1
$region0: #{tpu_custom_call.1}
  #allocation0 [shape = 'u32[]', space=smem, size = 0x4, offset = 0x4, fixed_abs, tag = 'smem constant byte address 0x4 - core index']
  #allocation1 [shape = 'u32[144,128]{1,0:T(1,128)}', space=vmem, size = 0x12000, scoped, tag = 'internal scratch']
  #allocation2 [shape = 'f32[1,1]{1,0:T(1,128)S(6)}', space=smem, size = 0x200, scoped, tag = 'scoped memory for tpu_custom_call.1']
  %s0 = inlined_call_operand.hbm [shape: f32[8,32], index: 0, kind: input, shape index: {}]
  %s1 = inlined_call_operand.hbm [shape: bf16[32,128], index: 1, kind: input, shape index: {}]
  %s2 = inlined_call_operand.vmem [shape: f32[1,128], index: 2, kind: input, shape index: {}]
  %s3 = inlined_call_operand.hbm [shape: bf16[128,128], index: 3, kind: input, shape index: {}]
  %s4 = inlined_call_operand.vmem [shape: f32[1,128], index: 4, kind: input, shape index: {}]
  %s5 = inlined_call_operand.vmem [shape: f32[1,128], index: 5, kind: input, shape index: {}]
  %s6 = inlined_call_operand.<no memory space> [shape: f32[1,1], index: 6, kind: input, shape index: {}]
  %s7 = inlined_call_operand.vmem [shape: f32[8,1], index: 7, kind: output, shape index: {}]
  %s8 = sld [smem:[#allocation0]]
  $region50: #{tpu_custom_call.1} parent=0
    _
  %s10 = ssub.s32 1, %s8
  %s11 = scalar_select 0, %s10, %s8
  %12 = sst [smem:[#allocation2]] %s6
  $region1: #{tpu_custom_call.1} parent=0
    #allocation3 [shape = 'u8[4096]{0}', space=vmem, size = 0x1000, scoped, tag = 'input window, operand 0, single buffered']
    #allocation4 [shape = 's32[1]{0}', space=sflag, size = 0x4, scoped, tag = 'scoped memory for tpu_custom_call.1']
    #allocation5 [shape = 'u8[8192]{0}', space=vmem, size = 0x2000, scoped, tag = 'input window, operand 1, single buffered']
    #allocation6 [shape = 's32[1]{0}', space=sflag, size = 0x4, scoped, tag = 'scoped memory for tpu_custom_call.1']
    #allocation7 [shape = 'u8[32768]{0}', space=vmem, size = 0x8000, scoped, tag = 'input window, operand 3, single buffered']
    %13 = vsyncpa [#allocation4], 0
    %14 = vsyncpa [#allocation6], 0
    // Predicated region
    $region2: #{tpu_custom_call.1} parent=1 // pred_check
      _
    $region3: #{tpu_custom_call.1} parent=1 // pred_check_branch
      %16 = sbr.rel (0) target = $region5
    $region4: #{tpu_custom_call.1} parent=1 // pred_region
      %s18 = ssub.s32 128, 128
      %19 = vsyncadd [#allocation4], %s18
      %s21 = sshll.u32 [#allocation3], 4
      %s22 = int_to_ptr.vmem [resolvable:$true] %s21
      %24 = dma.hbm_to_vmem [thread:$0]  %s0, 128, %s22, [#allocation4]
    $region5: #{tpu_custom_call.1} parent=1 // pred_fallthru
      _
    // Predicated region
    $region6: #{tpu_custom_call.1} parent=1 // pred_check
      _
    $region7: #{tpu_custom_call.1} parent=1 // pred_check_branch
      %26 = sbr.rel (0) target = $region9
    $region8: #{tpu_custom_call.1} parent=1 // pred_region
      %s28 = ssub.s32 256, 256
      %29 = vsyncadd [#allocation6], %s28
      %s30 = sshll.u32 [#allocation5], 4
      %s31 = int_to_ptr.vmem [resolvable:$true] %s30
      %36 = dma.hbm_to_vmem [thread:$0]  %s1, 256, %s31, [#allocation6], 64, 64, 4
    $region9: #{tpu_custom_call.1} parent=1 // pred_fallthru
      _
    // Predicated region
    $region10: #{tpu_custom_call.1} parent=1 // pred_check
      _
    $region11: #{tpu_custom_call.1} parent=1 // pred_check_branch
      %38 = sbr.rel (0) target = $region13
    $region12: #{tpu_custom_call.1} parent=1 // pred_region
      _
    $region13: #{tpu_custom_call.1} parent=1 // pred_fallthru
      _
    // Predicated region
    $region14: #{tpu_custom_call.1} parent=1 // pred_check
      _
    $region15: #{tpu_custom_call.1} parent=1 // pred_check_branch
      %40 = sbr.rel (0) target = $region17
    $region16: #{tpu_custom_call.1} parent=1 // pred_region
      %s42 = ssub.s32 1024, 1024
      %43 = vsyncadd [#allocation6], %s42
      %s44 = sshll.u32 [#allocation7], 4
      %s45 = int_to_ptr.vmem [resolvable:$true] %s44
      %50 = dma.hbm_to_vmem [thread:$0]  %s3, 1024, %s45, [#allocation6], 64, 64, 4
    $region17: #{tpu_custom_call.1} parent=1 // pred_fallthru
      _
    // Predicated region
    $region18: #{tpu_custom_call.1} parent=1 // pred_check
      _
    $region19: #{tpu_custom_call.1} parent=1 // pred_check_branch
      %52 = sbr.rel (0) target = $region21
    $region20: #{tpu_custom_call.1} parent=1 // pred_region
      _
    $region21: #{tpu_custom_call.1} parent=1 // pred_fallthru
      _
    // Predicated region
    $region22: #{tpu_custom_call.1} parent=1 // pred_check
      _
    $region23: #{tpu_custom_call.1} parent=1 // pred_check_branch
      %54 = sbr.rel (0) target = $region25
    $region24: #{tpu_custom_call.1} parent=1 // pred_region
      _
    $region25: #{tpu_custom_call.1} parent=1 // pred_fallthru
      _
    // Predicated region
    $region26: #{tpu_custom_call.1} parent=1 // pred_check
      _
    $region27: #{tpu_custom_call.1} parent=1 // pred_check_branch
      %56 = sbr.rel (0) target = $region29
    $region28: #{tpu_custom_call.1} parent=1 // pred_region
      _
    $region29: #{tpu_custom_call.1} parent=1 // pred_fallthru
      _
    // Predicated region
    $region30: #{tpu_custom_call.1} parent=1 // pred_check
      _
    $region31: #{tpu_custom_call.1} parent=1 // pred_check_branch
      %58 = sbr.rel (0) target = $region33
    $region32: #{tpu_custom_call.1} parent=1 // pred_region
      %59 = dma.done [#allocation4], 128
    $region33: #{tpu_custom_call.1} parent=1 // pred_fallthru
      _
    // Predicated region
    $region34: #{tpu_custom_call.1} parent=1 // pred_check
      _
    $region35: #{tpu_custom_call.1} parent=1 // pred_check_branch
      %61 = sbr.rel (0) target = $region37
    $region36: #{tpu_custom_call.1} parent=1 // pred_region
      %62 = dma.done [#allocation6], 256
    $region37: #{tpu_custom_call.1} parent=1 // pred_fallthru
      _
    // Predicated region
    $region38: #{tpu_custom_call.1} parent=1 // pred_check
      _
    $region39: #{tpu_custom_call.1} parent=1 // pred_check_branch
      %64 = sbr.rel (0) target = $region41
    $region40: #{tpu_custom_call.1} parent=1 // pred_region
      %65 = dma.done [#allocation6], 1024
    $region41: #{tpu_custom_call.1} parent=1 // pred_fallthru
      _
    %v67 = vld [vmem:[#allocation3] sm:$0xff]
    %v68 = vpack.c.bf16 %v67, %v67
    %v69 = vld [vmem:[#allocation5] sm:$0xf]
    %v70 = vld [vmem:[#allocation5 + $0x4] sm:$0xf]
    %v71 = vld [vmem:[#allocation5 + $0x8] sm:$0xf]
    %v72 = vld [vmem:[#allocation5 + $0xc] sm:$0xf]
    %v73 = vld [vmem:[%s2] sm:$0x1]
    %v75 = vlaneseq
    %v76 = vshrl.u32 %v75, 7
    %v77 = vsub.s32 0, %v76
    %v78 = vrot.slane %v73, %v77
    %v84 = vunpack.c.l.b16 %v69
    %v85 = vunpack.c.l.b16 %v70
    %v86 = vunpack.c.l.b16 %v71
    %v87 = vunpack.c.l.b16 %v72
    %v88 = vpack.c.b16 %v85, %v84
    %v89 = vpack.c.b16 %v87, %v86
    %vm92 = vcmask 261120
    %v94 = vsel %vm92, %v68, 0
    %96 = vmatprep.subr.bf16.mxu0 0
    %97 = vmatpush1.bf16.msra.mxu0 0
    %98 = vmatprep.subr.bf16.mxu0 0
    %99 = vmatpush1.bf16.msra.mxu0 0
    %100 = vmatprep.subr.bf16.mxu0 0
    %101 = vmatpush1.bf16.msra.mxu0 0
    %102 = vmatprep.subr.bf16.mxu0 0
    %103 = vmatpush1.bf16.msra.mxu0 0
    %104 = vmatprep.subr.bf16.mxu0 0
    %105 = vmatpush1.bf16.msra.mxu0 0
    %106 = vmatprep.subr.bf16.mxu0 0
    %107 = vmatpush1.bf16.msra.mxu0 0
    %108 = vmatprep.subr.bf16.mxu0 0
    %109 = vmatpush1.bf16.msra.mxu0 %v89
    %110 = vmatprep.subr.bf16.mxu0 0
    %111 = vmatpush1.bf16.msra.mxu0 %v88
    %112 = vmatprep.subr.bf16.mxu0 0
    %113 = vmatpush2.bf16.msra.mxu0 0
    %114 = vmatprep.subr.bf16.mxu0 0
    %115 = vmatpush2.bf16.msra.mxu0 0
    %116 = vmatprep.subr.bf16.mxu0 0
    %117 = vmatpush2.bf16.msra.mxu0 0
    %118 = vmatprep.subr.bf16.mxu0 0
    %119 = vmatpush2.bf16.msra.mxu0 0
    %120 = vmatprep.subr.bf16.mxu0 0
    %121 = vmatpush2.bf16.msra.mxu0 0
    %122 = vmatprep.subr.bf16.mxu0 0
    %123 = vmatpush2.bf16.msra.mxu0 0
    %124 = vmatprep.subr.bf16.mxu0 0
    %125 = vmatpush2.bf16.msra.mxu0 0
    %126 = vmatprep.subr.bf16.mxu0 0
    %127 = vmatpush2.bf16.msra.mxu0 0
    %128 = vmatprep.mubr.bf16.mxu0 0
    %129 = vmatmul.mubr.bf16.gmra.mxu0 %v94
    %v130 = vpop.f32.mrf.mxu0
    %v131 = vadd.f32 %v78, %v130
    %v132 = vpop.f32.mrf.mxu0
    %v133 = vpop.f32.mrf.mxu0
    %v134 = vpop.f32.mrf.mxu0
    %135 = vdwg.mxu0
    %v136 = vmax.f32 %v131, 0.0
    %v137 = vpack.c.bf16 %v136, %v136
    %v138 = vld [vmem:[#allocation7] sm:$0xf]
    %v139 = vld [vmem:[#allocation7 + $0x4] sm:$0xf]
    %v140 = vld [vmem:[#allocation7 + $0x8] sm:$0xf]
    %v141 = vld [vmem:[#allocation7 + $0xc] sm:$0xf]
    %v142 = vld [vmem:[#allocation7 + $0x10] sm:$0xf]
    %v143 = vld [vmem:[#allocation7 + $0x14] sm:$0xf]
    %v144 = vld [vmem:[#allocation7 + $0x18] sm:$0xf]
    %v145 = vld [vmem:[#allocation7 + $0x1c] sm:$0xf]
    %v146 = vld [vmem:[#allocation7 + $0x20] sm:$0xf]
    %v147 = vld [vmem:[#allocation7 + $0x24] sm:$0xf]
    %v148 = vld [vmem:[#allocation7 + $0x28] sm:$0xf]
    %v149 = vld [vmem:[#allocation7 + $0x2c] sm:$0xf]
    %v150 = vld [vmem:[#allocation7 + $0x30] sm:$0xf]
    %v151 = vld [vmem:[#allocation7 + $0x34] sm:$0xf]
    %v152 = vld [vmem:[#allocation7 + $0x38] sm:$0xf]
    %v153 = vld [vmem:[#allocation7 + $0x3c] sm:$0xf]
    %v154 = vld [vmem:[%s4] sm:$0x1]
    %v156 = vlaneseq
    %v157 = vshrl.u32 %v156, 7
    %v158 = vsub.s32 0, %v157
    %v159 = vrot.slane %v154, %v158
    %v177 = vunpack.c.l.b16 %v138
    %v178 = vunpack.c.l.b16 %v139
    %v179 = vunpack.c.l.b16 %v140
    %v180 = vunpack.c.l.b16 %v141
    %v181 = vunpack.c.l.b16 %v142
    %v182 = vunpack.c.l.b16 %v143
    %v183 = vunpack.c.l.b16 %v144
    %v184 = vunpack.c.l.b16 %v145
    %v185 = vunpack.c.l.b16 %v146
    %v186 = vunpack.c.l.b16 %v147
    %v187 = vunpack.c.l.b16 %v148
    %v188 = vunpack.c.l.b16 %v149
    %v189 = vunpack.c.l.b16 %v150
    %v190 = vunpack.c.l.b16 %v151
    %v191 = vunpack.c.l.b16 %v152
    %v192 = vunpack.c.l.b16 %v153
    %v193 = vpack.c.b16 %v178, %v177
    %v194 = vpack.c.b16 %v180, %v179
    %v195 = vpack.c.b16 %v182, %v181
    %v196 = vpack.c.b16 %v184, %v183
    %v197 = vpack.c.b16 %v186, %v185
    %v198 = vpack.c.b16 %v188, %v187
    %v199 = vpack.c.b16 %v190, %v189
    %v200 = vpack.c.b16 %v192, %v191
    %209 = vmatprep.subr.bf16.mxu0 0
    %210 = vmatpush1.bf16.msra.mxu0 %v200
    %211 = vmatprep.subr.bf16.mxu0 0
    %212 = vmatpush1.bf16.msra.mxu0 %v199
    %213 = vmatprep.subr.bf16.mxu0 0
    %214 = vmatpush1.bf16.msra.mxu0 %v198
    %215 = vmatprep.subr.bf16.mxu0 0
    %216 = vmatpush1.bf16.msra.mxu0 %v197
    %217 = vmatprep.subr.bf16.mxu0 0
    %218 = vmatpush1.bf16.msra.mxu0 %v196
    %219 = vmatprep.subr.bf16.mxu0 0
    %220 = vmatpush1.bf16.msra.mxu0 %v195
    %221 = vmatprep.subr.bf16.mxu0 0
    %222 = vmatpush1.bf16.msra.mxu0 %v194
    %223 = vmatprep.subr.bf16.mxu0 0
    %224 = vmatpush1.bf16.msra.mxu0 %v193
    %225 = vmatprep.subr.bf16.mxu0 0
    %226 = vmatpush2.bf16.msra.mxu0 0
    %227 = vmatprep.subr.bf16.mxu0 0
    %228 = vmatpush2.bf16.msra.mxu0 0
    %229 = vmatprep.subr.bf16.mxu0 0
    %230 = vmatpush2.bf16.msra.mxu0 0
    %231 = vmatprep.subr.bf16.mxu0 0
    %232 = vmatpush2.bf16.msra.mxu0 0
    %233 = vmatprep.subr.bf16.mxu0 0
    %234 = vmatpush2.bf16.msra.mxu0 0
    %235 = vmatprep.subr.bf16.mxu0 0
    %236 = vmatpush2.bf16.msra.mxu0 0
    %237 = vmatprep.subr.bf16.mxu0 0
    %238 = vmatpush2.bf16.msra.mxu0 0
    %239 = vmatprep.subr.bf16.mxu0 0
    %240 = vmatpush2.bf16.msra.mxu0 0
    %241 = vmatprep.mubr.bf16.mxu0 0
    %242 = vmatmul.mubr.bf16.gmra.mxu0 %v137
    %v243 = vpop.f32.mrf.mxu0
    %v244 = vadd.f32 %v159, %v243
    %v245 = vpop.f32.mrf.mxu0
    %v246 = vpop.f32.mrf.mxu0
    %v247 = vpop.f32.mrf.mxu0
    %248 = vdwg.mxu0
    %v249 = vmax.f32 %v244, 0.0
    %v250 = vld [vmem:[%s5] sm:$0x1]
    %v252 = vlaneseq
    %v253 = vshrl.u32 %v252, 7
    %v254 = vsub.s32 0, %v253
    %v255 = vrot.slane %v250, %v254
    %v257 = vmul.f32 %v249, %v255
    %258 = vadd.xlane.f32.xlu0 %v257
    %v259 = vpop.xlane.xlu0 %258
    %s260 = sld [smem:[#allocation2]]
    %v261 = vstv %s260
    %v262 = vadd.f32 %v259, %v261
    %v263 = vsub.f32 0.0, %v262
    %v264 = vmul.f32 %v263, 1.442695
    %v265 = vpow.pop %v264
    %v266 = vadd.f32 %v265, 1.0
    %v267 = vrcp.pop %v266
    %vm268 = vcmask 7168
    %269 = vst.msk [vmem:[%s7] sm:$0xff] %vm268, %v267
    // Predicated region
    $region42: #{tpu_custom_call.1} parent=1 // pred_check
      _
    $region43: #{tpu_custom_call.1} parent=1 // pred_check_branch
      %271 = sbr.rel (0) target = $region45
    $region44: #{tpu_custom_call.1} parent=1 // pred_region
      _
    $region45: #{tpu_custom_call.1} parent=1 // pred_fallthru
      _
    // Predicated region
    $region46: #{tpu_custom_call.1} parent=1 // pred_check
      _
    $region47: #{tpu_custom_call.1} parent=1 // pred_check_branch
      %273 = sbr.rel (0) target = $region49
    $region48: #{tpu_custom_call.1} parent=1 // pred_region
      _
    $region49: #{tpu_custom_call.1} parent=1 // pred_fallthru
      _
    %274 = vsyncpa [#allocation4], 1
    %275 = vsyncpa [#allocation6], 1

</llo_original>
